<compile_context>
chip_gen: v6e
topology: v6e:2x2x1
jax: 0.10.0
libtpu: 0.0.40
codegen_flags: <defaults>
</compile_context>

<pallas_src>
import functools

import jax
import jax.numpy as jnp
from jax.experimental import pallas as pl
from jax.experimental.pallas import tpu as pltpu


def _round_up(x, m):
    return (x + m - 1) // m * m


def _vmem_capacity_bytes():
    """Physical VMEM of the local TPU (64 MiB on v7x, 128 MiB on v5e/v6e)."""
    try:
        return int(pltpu.get_tpu_info().vmem_capacity_bytes)
    except Exception:
        return 64 * 1024 * 1024  # conservative fallback


def _fused_mlp_kernel(x_ref, w_ref, b_ref, o_ref, act_ref, *, weights_resident):
    """One grid step = one (batch tile, layer) pair.

    x_ref   : (bm, D)   compute dtype  input tile (consumed at layer 0 only)
    w_ref   : (n, D, D) resident  |  (1, D, D) streamed   weights (zero-padded)
    b_ref   : (n, 1, D) resident  |  (1, 1, D) streamed   f32 bias (zero-padded)
    o_ref   : (bm, D)   compute dtype  final output tile (written at last layer)
    act_ref : (bm, D)   compute dtype  VMEM-resident running activation
    """
    layer = pl.program_id(1)
    n_layers = pl.num_programs(1)

    # Layer 0: seed the resident activation from the HBM input tile.
    @pl.when(layer == 0)
    def _():
        act_ref[...] = x_ref[...]

    idx = layer if weights_resident else 0
    w = w_ref[idx]          # (D, D)
    b = b_ref[idx]          # (1, D), f32

    # MXU matmul with f32 accumulation; bias + ReLU on the VPU in f32.
    y = jnp.dot(act_ref[...], w, preferred_element_type=jnp.float32)
    y = jnp.maximum(y + b, 0.0)

    @pl.when(layer < n_layers - 1)
    def _():
        act_ref[...] = y.astype(act_ref.dtype)

    @pl.when(layer == n_layers - 1)
    def _():
        o_ref[...] = y.astype(o_ref.dtype)


def _choose_config(batch, d_pad, n_layers, compute_dtype, block_m):
    """Pick (batch tile, weight residency, vmem limit) from the chip's VMEM."""
    cbytes = jnp.dtype(compute_dtype).itemsize
    cap = _vmem_capacity_bytes()
    # Headroom below physical: ~54 MiB on v7x (64 MiB), ~108 MiB on v5e/v6e (128 MiB).
    budget = max(16 * 1024 * 1024, min(int(cap * 0.85), cap - 8 * 1024 * 1024))

    if block_m is None:
        # 64 MiB VMEM -> v7x (bm~512 covers its roofline per TC);
        # 128 MiB -> v5e/v6e (v6e's 918 TF/s MXU wants bm>=~768; v5e is already
        # past its crossover at 256, larger bm is harmless with resident weights).
        block_m = 512 if cap <= 64 * 1024 * 1024 else 768

    margin = 2 * 1024 * 1024  # compiler-internal scratch etc.

    def tile_bytes(bm):
        # 2x double-buffered x tiles + 2x double-buffered out tiles (compute dtype)
        # + resident activation scratch + f32 matmul/ReLU temporary.
        return bm * d_pad * (2 * cbytes + 2 * cbytes + cbytes + 4)

    resident_w = n_layers * d_pad * d_pad * cbytes + n_layers * d_pad * 4
    streamed_w = 2 * d_pad * d_pad * cbytes + 2 * d_pad * 4

    # Keep the whole weight stack VMEM-resident whenever it fits (weights move
    # HBM->VMEM exactly once instead of once per batch tile).
    weights_resident = resident_w + tile_bytes(16) + margin <= budget
    weight_bytes = resident_w if weights_resident else streamed_w

    # bf16 packs two rows per sublane -> round the batch tile to 16, not 8.
    bm = max(16, min(_round_up(block_m, 16), _round_up(batch, 16)))
    while bm > 16 and weight_bytes + tile_bytes(bm) + margin > budget:
        bm = max(16, _round_up(bm // 2, 16))
    # TODO(synk): if even streamed weights overflow at bm=16 (huge D on v7x),
    # add N/K tiling of the weight rather than shrinking bm further.

    return bm, weights_resident, int(budget)


@functools.partial(jax.jit, static_argnames=("in_dim", "out_dim", "block_m"))
def _mlp_group_apply(x, w_stack, b_stack, in_dim, out_dim, block_m=None):
    batch = x.shape[0]
    n_layers, d_pad, _ = w_stack.shape
    cdtype = w_stack.dtype

    bm, resident, vmem_limit = _choose_config(batch, d_pad, n_layers, cdtype, block_m)
    m_pad = _round_up(batch, bm)

    # Zero-pad batch/features inside the jit so it fuses with dispatch; padded
    # feature columns / weight rows stay identically zero through matmul+ReLU.
    xp = jnp.zeros((m_pad, d_pad), cdtype).at[:batch, :in_dim].set(x.astype(cdtype))

    if resident:
        # Whole stacks live in VMEM once (no per-tile DMA, no double buffering).
        w_spec = pl.BlockSpec(memory_space=pltpu.MemorySpace.VMEM)
        b_spec = pl.BlockSpec(memory_space=pltpu.MemorySpace.VMEM)
    else:
        # Large-D fallback: stream one layer's weight per grid step.
        # TODO(synk): sweep pipeline_mode=pl.Buffered(3) here when near the
        # DMA/compute crossover.
        w_spec = pl.BlockSpec((1, d_pad, d_pad), lambda i, l: (l, 0, 0))
        b_spec = pl.BlockSpec((1, 1, d_pad), lambda i, l: (l, 0, 0))

    out = pl.pallas_call(
        functools.partial(_fused_mlp_kernel, weights_resident=resident),
        out_shape=jax.ShapeDtypeStruct((m_pad, d_pad), cdtype),
        grid_spec=pltpu.PrefetchScalarGridSpec(
            num_scalar_prefetch=0,
            grid=(m_pad // bm, n_layers),                     # batch outer, layer inner
            in_specs=[
                pl.BlockSpec((bm, d_pad), lambda i, l: (i, 0)),  # x tile
                w_spec,
                b_spec,
            ],
            out_specs=pl.BlockSpec((bm, d_pad), lambda i, l: (i, 0)),
            scratch_shapes=[pltpu.VMEM((bm, d_pad), cdtype)],
        ),
        compiler_params=pltpu.CompilerParams(
            dimension_semantics=("parallel", "arbitrary"),
            vmem_limit_bytes=vmem_limit,
        ),
    )(xp, w_stack, b_stack)

    return out[:batch, :out_dim].astype(x.dtype)


def prepare_mlp_group_params(params, compute_dtype=jnp.bfloat16):
    """Stack + zero-pad the per-layer (W, b) once; reuse across forward calls."""
    n_layers = len(params)
    in_dim, out_dim = params[0][0].shape
    # One lane-dense padded feature width for every layer keeps zero-padding exact.
    d_pad = _round_up(max(in_dim, out_dim), 128)
    w_stack = jnp.zeros((n_layers, d_pad, d_pad), compute_dtype)
    b_stack = jnp.zeros((n_layers, 1, d_pad), jnp.float32)
    for i, (w, b) in enumerate(params):
        k_i, n_i = w.shape
        w_stack = w_stack.at[i, :k_i, :n_i].set(w.astype(compute_dtype))
        b_stack = b_stack.at[i, 0, :n_i].set(b.astype(jnp.float32))
    return {"w": w_stack, "b": b_stack, "in_dim": in_dim, "out_dim": out_dim}


def mlp_group_forward(x, prepared, *, block_m=None):
    """Forward pass of MLP_Group: n x (Linear + ReLU), fused into one Pallas kernel."""
    return _mlp_group_apply(
        x, prepared["w"], prepared["b"],
        in_dim=prepared["in_dim"], out_dim=prepared["out_dim"], block_m=block_m)


def init_mlp_group_params(key, in_dim, out_dim, n, dtype=jnp.float32):
    """Deterministic params matching PyTorch nn.Linear default init shapes."""
    params = []
    for i in range(int(n)):
        fan_in = in_dim if i == 0 else out_dim
        key, kw, kb = jax.random.split(key, 3)
        bound = 1.0 / (fan_in ** 0.5)
        w = jax.random.uniform(kw, (fan_in, out_dim), dtype, -bound, bound)
        b = jax.random.uniform(kb, (out_dim,), dtype, -bound, bound)
        params.append((w, b))
    return params


def mlp_group_reference(x, params, compute_dtype=jnp.bfloat16):
    """Pure-JAX reference mirroring the kernel's dtypes (bf16 matmul, f32 accumulate)."""
    a = x.astype(compute_dtype)
    for w, b in params:
        y = jnp.dot(a, w.astype(compute_dtype), preferred_element_type=jnp.float32)
        y = jnp.maximum(y + b.astype(jnp.float32)[None, :], 0.0)
        a = y.astype(compute_dtype)
    return a.astype(x.dtype)


if __name__ == "__main__":
    key = jax.random.PRNGKey(0)
    k_x, k_p = jax.random.split(key)

    # Small demo shapes: non-multiple-of-16 batch and non-multiple-of-128 features
    # exercise the padding paths; n=3 layers exercise the resident-weight path.
    batch, in_dim, out_dim, n = 10, 24, 40, 3
    x = jax.random.normal(k_x, (batch, in_dim), jnp.float32)
    params = init_mlp_group_params(k_p, in_dim, out_dim, n)
    prepared = prepare_mlp_group_params(params)

    out = jax.block_until_ready(mlp_group_forward(x, prepared))
    ref = mlp_group_reference(x, params)

    assert out.shape == (batch, out_dim), out.shape
    # bf16 matmul inputs + bf16 output writeback -> compare against the
    # dtype-matched reference with a tolerance covering MXU vs XLA summation order.
    assert jnp.allclose(out, ref, atol=2e-2, rtol=2e-2), float(
        jnp.max(jnp.abs(out - ref)))

    print("KERNEL_OK")
</pallas_src>

<mosaic_0001>
module attributes {stable_mosaic.version = 11 : i64} {
  func.func @_fused_mlp_kernel(%arg0: i32, %arg1: i32, %arg2: memref<16x128xbf16, #tpu.memory_space<vmem>>, %arg3: memref<3x128x128xbf16, #tpu.memory_space<vmem>>, %arg4: memref<3x1x128xf32, #tpu.memory_space<vmem>>, %arg5: memref<16x128xbf16, #tpu.memory_space<vmem>>, %arg6: memref<16x128xbf16, #tpu.memory_space<vmem>>) attributes {dimension_semantics = [#tpu.dimension_semantics<parallel>, #tpu.dimension_semantics<arbitrary>], iteration_bounds = array<i64: 1, 3>, scalar_prefetch = 0 : i64, scratch_operands = 1 : i64, tpu.core_type = #tpu.core_type<tc>, window_params = [{transform_indices = @transform_0, window_bounds = array<i64: 16, 128>}, {pipeline_mode = #tpu.pipeline_mode<synchronous>, transform_indices = @transform_1, window_bounds = array<i64: 3, 128, 128>}, {pipeline_mode = #tpu.pipeline_mode<synchronous>, transform_indices = @transform_2, window_bounds = array<i64: 3, 1, 128>}, {transform_indices = @transform_3, window_bounds = array<i64: 16, 128>}]} {
    %c0_i32 = arith.constant 0 : i32
    %0 = arith.cmpi eq, %arg1, %c0_i32 : i32
    %1 = arith.extui %0 : i1 to i32
    %c0_i32_0 = arith.constant 0 : i32
    %2 = arith.cmpi ne, %1, %c0_i32_0 : i32
    scf.if %2 {
      %c0_10 = arith.constant 0 : index
      %c0_11 = arith.constant 0 : index
      %21 = vector.load %arg2[%c0_10, %c0_11] : memref<16x128xbf16, #tpu.memory_space<vmem>>, vector<16x128xbf16>
      %c0_12 = arith.constant 0 : index
      %c0_13 = arith.constant 0 : index
      %22 = vector.load %arg6[%c0_12, %c0_13] : memref<16x128xbf16, #tpu.memory_space<vmem>>, vector<16x128xbf16>
      tpu.vector_store %arg6[%c0_12, %c0_13], %21 {strides = array<i32>} : memref<16x128xbf16, #tpu.memory_space<vmem>>, vector<16x128xbf16>,
    } else {
    }
    %3 = arith.index_cast %arg1 : i32 to index
    %c0 = arith.constant 0 : index
    %c0_1 = arith.constant 0 : index
    %4 = vector.load %arg3[%3, %c0, %c0_1] : memref<3x128x128xbf16, #tpu.memory_space<vmem>>, vector<1x128x128xbf16>
    %5 = vector.shape_cast %4 : vector<1x128x128xbf16> to vector<128x128xbf16>
    %6 = arith.index_cast %arg1 : i32 to index
    %c0_2 = arith.constant 0 : index
    %c0_3 = arith.constant 0 : index
    %7 = vector.load %arg4[%6, %c0_2, %c0_3] : memref<3x1x128xf32, #tpu.memory_space<vmem>>, vector<1x1x128xf32>
    %8 = vector.shape_cast %7 : vector<1x1x128xf32> to vector<1x128xf32>
    %c0_4 = arith.constant 0 : index
    %c0_5 = arith.constant 0 : index
    %9 = vector.load %arg6[%c0_4, %c0_5] : memref<16x128xbf16, #tpu.memory_space<vmem>>, vector<16x128xbf16>
    %cst = arith.constant dense<0.000000e+00> : vector<16x128xf32>
    %10 = tpu.matmul %9, %5, %cst {dimension_numbers = #tpu.dot_dimension_numbers<[1], [0], [0], [1], [0, 0, 1, 1], [], []>} : vector<16x128xbf16>, vector<128x128xbf16>, vector<16x128xf32> -> vector<16x128xf32>
    %11 = vector.broadcast %8 : vector<1x128xf32> to vector<16x128xf32>
    %12 = arith.addf %10, %11 : vector<16x128xf32>
    %cst_6 = arith.constant 0.000000e+00 : f32
    %13 = vector.broadcast %cst_6 : f32 to vector<16x128xf32>
    %14 = arith.maximumf %12, %13 : vector<16x128xf32>
    %c2_i32 = arith.constant 2 : i32
    %15 = arith.cmpi slt, %arg1, %c2_i32 : i32
    %16 = arith.extui %15 : i1 to i32
    %c0_i32_7 = arith.constant 0 : i32
    %17 = arith.cmpi ne, %16, %c0_i32_7 : i32
    scf.if %17 {
      %21 = arith.truncf %14 : vector<16x128xf32> to vector<16x128xbf16>
      %c0_10 = arith.constant 0 : index
      %c0_11 = arith.constant 0 : index
      %22 = vector.load %arg6[%c0_10, %c0_11] : memref<16x128xbf16, #tpu.memory_space<vmem>>, vector<16x128xbf16>
      tpu.vector_store %arg6[%c0_10, %c0_11], %21 {strides = array<i32>} : memref<16x128xbf16, #tpu.memory_space<vmem>>, vector<16x128xbf16>,
    } else {
    }
    %c2_i32_8 = arith.constant 2 : i32
    %18 = arith.cmpi eq, %arg1, %c2_i32_8 : i32
    %19 = arith.extui %18 : i1 to i32
    %c0_i32_9 = arith.constant 0 : i32
    %20 = arith.cmpi ne, %19, %c0_i32_9 : i32
    scf.if %20 {
      %21 = arith.truncf %14 : vector<16x128xf32> to vector<16x128xbf16>
      %c0_10 = arith.constant 0 : index
      %c0_11 = arith.constant 0 : index
      %22 = vector.load %arg5[%c0_10, %c0_11] : memref<16x128xbf16, #tpu.memory_space<vmem>>, vector<16x128xbf16>
      tpu.vector_store %arg5[%c0_10, %c0_11], %21 {strides = array<i32>} : memref<16x128xbf16, #tpu.memory_space<vmem>>, vector<16x128xbf16>,
    } else {
    }
    return
  }
  func.func @transform_0(%arg0: i32, %arg1: i32) -> (i32, i32) {
    %c0_i32 = arith.constant 0 : i32
    %c0_i32_0 = arith.constant 0 : i32
    return %arg0, %c0_i32 : i32, i32
  }
  func.func @transform_1(%arg0: i32, %arg1: i32) -> (i32, i32, i32) {
    %c0_i32 = arith.constant 0 : i32
    %c0_i32_0 = arith.constant 0 : i32
    %c0_i32_1 = arith.constant 0 : i32
    %c0_i32_2 = arith.constant 0 : i32
    return %c0_i32, %c0_i32_0, %c0_i32_1 : i32, i32, i32
  }
  func.func @transform_2(%arg0: i32, %arg1: i32) -> (i32, i32, i32) {
    %c0_i32 = arith.constant 0 : i32
    %c0_i32_0 = arith.constant 0 : i32
    %c0_i32_1 = arith.constant 0 : i32
    %c0_i32_2 = arith.constant 0 : i32
    return %c0_i32, %c0_i32_0, %c0_i32_1 : i32, i32, i32
  }
  func.func @transform_3(%arg0: i32, %arg1: i32) -> (i32, i32) {
    %c0_i32 = arith.constant 0 : i32
    %c0_i32_0 = arith.constant 0 : i32
    return %arg0, %c0_i32 : i32, i32
  }
}

</mosaic_0001>

<llo_original>
// kernel: _mlp_group_apply.1
$region0: #{_mlp_group_apply.1}
  #allocation0 [shape = 'u32[]', space=smem, size = 0x4, offset = 0x4, fixed_abs, tag = 'smem constant byte address 0x4 - core index']
  #allocation1 [shape = 'u32[144,128]{1,0:T(1,128)}', space=vmem, size = 0x12000, scoped, tag = 'internal scratch']
  #allocation2 [shape = 'bf16[16,128]{1,0:T(8,128)(2,1)}', space=vmem, size = 0x1000, scoped, tag = 'scratch operand']
  %s0 = inlined_call_operand.vmem [shape: bf16[16,128], index: 0, kind: input, shape index: {}]
  %s1 = inlined_call_operand.hbm [shape: bf16[3,128,128], index: 1, kind: input, shape index: {}]
  %s2 = inlined_call_operand.vmem [shape: f32[3,1,128], index: 2, kind: input, shape index: {}]
  %s3 = inlined_call_operand.vmem [shape: bf16[16,128], index: 3, kind: output, shape index: {}]
  %s4 = sld [smem:[#allocation0]]
  $region61: #{_mlp_group_apply.1} parent=0
    _
  %s6 = ssub.s32 1, %s4
  %s7 = scalar_select 0, %s6, %s4
  $region1: #{_mlp_group_apply.1} parent=0
    #allocation3 [shape = 'u8[98304]{0}', space=vmem, size = 0x18000, scoped, tag = 'input window, operand 1, single buffered']
    #allocation4 [shape = 's32[2]{0}', space=sflag, size = 0x8, scoped, tag = 'scoped memory for _mlp_group_apply.1']
    %8 = vsyncpa [#allocation4], 0
    loop: start=0, step=1, limit=5
    $region2: #{_mlp_group_apply.1} parent=1 // loop_pre_header
      _
    $region3: #{_mlp_group_apply.1} parent=1 // loop_header
      %s10 = sphi 0, %s14
      %p11 = scmp.ge.s32.totalorder %s10, 5
      %s17 = sphi 0, %s29
      %s18 = sphi 0, %s25
      %s19 = sphi 0, %s17
      %s20 = sphi 0, %s18
      %s21 = sphi 0, %s19
      %s22 = sphi 0, %s20
      %s32 = sphi 0, %s34
      %s35 = sphi 0, %s32
      %s36 = sphi 0, %s35
      %s52 = sphi 0, %s36
      %s56 = sphi 0, %s56
      %s58 = sphi 0, %s56
      %s59 = sphi 0, %s58
      %s73 = sphi 0, %s59
      %s77 = sphi 0, %s77
      %s79 = sphi 0, %s77
      %s80 = sphi 0, %s79
      %s94 = sphi 0, %s80
      %s100 = sphi 0, %s102
      %s103 = sphi 0, %s100
      %s104 = sphi 0, %s103
      %s120 = sphi 0, %s104
    $region4: #{_mlp_group_apply.1} parent=1 // loop_header_branch
      %13 = sbr.rel (%p11) target = $region8
    $region5: #{_mlp_group_apply.1} parent=1 // loop_body
      %s15 = ssub.s32 %s10, 1
      %s16 = ssub.s32 %s10, 2
      %s23 = sadd.s32 1, %s18
      %p24 = scmp.ge.s32.totalorder %s23, 3
      %s25 = scalar_select %p24, 0, %s23
      %s26 = sadd.s32 1, %s17
      %s27 = scalar_select %p24, %s26, %s17
      %p28 = scmp.ge.s32.totalorder %s27, 1
      %s29 = scalar_select %p28, 0, %s27
      %s30 = ssub.s32 %s17, %s29
      %p31 = scmp.eq.s32.totalorder %s30, 0
      %s33 = sadd.s32 %s32, 1
      %s34 = scalar_select %p31, %s32, %s33
      %p37 = pneg %p31
      %p38 = scmp.eq.s32.totalorder %s10, 2
      %p39 = por %p37, %p38
      %p40 = scmp.ne.s32.totalorder %s32, %s35
      %p41 = scmp.eq.s32.totalorder %s10, 0
      %p42 = por %p40, %p41
      %p43 = scmp.ne.s32.totalorder %s32, %s35
      %p44 = scmp.eq.s32.totalorder %s15, 2
      %p45 = por %p43, %p44
      %p46 = scmp.ne.s32.totalorder %s35, %s36
      %p47 = scmp.eq.s32.totalorder %s15, 0
      %p48 = por %p46, %p47
      %p49 = scmp.ne.s32.totalorder %s35, %s36
      %p50 = scmp.eq.s32.totalorder %s16, 2
      %p51 = por %p49, %p50
      %p53 = scmp.ne.s32.totalorder %s36, %s52
      %p54 = scmp.eq.s32.totalorder %s16, 0
      %p55 = por %p53, %p54
      %s57 = sadd.s32 %s56, 1
      %p60 = scmp.eq.s32.totalorder %s10, 2
      %p61 = scmp.ne.s32.totalorder %s56, %s58
      %p62 = scmp.eq.s32.totalorder %s10, 0
      %p63 = por %p61, %p62
      %p64 = scmp.ne.s32.totalorder %s56, %s58
      %p65 = scmp.eq.s32.totalorder %s15, 2
      %p66 = por %p64, %p65
      %p67 = scmp.ne.s32.totalorder %s58, %s59
      %p68 = scmp.eq.s32.totalorder %s15, 0
      %p69 = por %p67, %p68
      %p70 = scmp.ne.s32.totalorder %s58, %s59
      %p71 = scmp.eq.s32.totalorder %s16, 2
      %p72 = por %p70, %p71
      %p74 = scmp.ne.s32.totalorder %s59, %s73
      %p75 = scmp.eq.s32.totalorder %s16, 0
      %p76 = por %p74, %p75
      %s78 = sadd.s32 %s77, 1
      %p81 = scmp.eq.s32.totalorder %s10, 2
      %p82 = scmp.ne.s32.totalorder %s77, %s79
      %p83 = scmp.eq.s32.totalorder %s10, 0
      %p84 = por %p82, %p83
      %p85 = scmp.ne.s32.totalorder %s77, %s79
      %p86 = scmp.eq.s32.totalorder %s15, 2
      %p87 = por %p85, %p86
      %p88 = scmp.ne.s32.totalorder %s79, %s80
      %p89 = scmp.eq.s32.totalorder %s15, 0
      %p90 = por %p88, %p89
      %p91 = scmp.ne.s32.totalorder %s79, %s80
      %p92 = scmp.eq.s32.totalorder %s16, 2
      %p93 = por %p91, %p92
      %p95 = scmp.ne.s32.totalorder %s80, %s94
      %p96 = scmp.eq.s32.totalorder %s16, 0
      %p97 = por %p95, %p96
      %s98 = ssub.s32 %s17, %s29
      %p99 = scmp.eq.s32.totalorder %s98, 0
      %s101 = sadd.s32 %s100, 1
      %s102 = scalar_select %p99, %s100, %s101
      %p105 = pneg %p99
      %p106 = scmp.eq.s32.totalorder %s10, 2
      %p107 = por %p105, %p106
      %p108 = scmp.ne.s32.totalorder %s100, %s103
      %p109 = scmp.eq.s32.totalorder %s10, 0
      %p110 = por %p108, %p109
      %p111 = scmp.ne.s32.totalorder %s100, %s103
      %p112 = scmp.eq.s32.totalorder %s15, 2
      %p113 = por %p111, %p112
      %p114 = scmp.ne.s32.totalorder %s103, %s104
      %p115 = scmp.eq.s32.totalorder %s15, 0
      %p116 = por %p114, %p115
      %p117 = scmp.ne.s32.totalorder %s103, %s104
      %p118 = scmp.eq.s32.totalorder %s16, 2
      %p119 = por %p117, %p118
      %p121 = scmp.ne.s32.totalorder %s104, %s120
      %p122 = scmp.eq.s32.totalorder %s16, 0
      %p123 = por %p121, %p122
      %p124 = scmp.le.s32.totalorder 1, %s10
      %p125 = scmp.lt.s32.totalorder %s10, 4
      %p126 = pnand %p124, %p125
      %p127 = pneg %p126
      // Predicated region
      $region9: #{_mlp_group_apply.1} parent=5 // pred_check
        _
      $region10: #{_mlp_group_apply.1} parent=5 // pred_check_branch
        %129 = sbr.rel (%p126) target = $region12
      $region11: #{_mlp_group_apply.1} parent=5 // pred_region
        %s130 = ssub.s32 %s10, 1
        // Predicated region
        $region13: #{_mlp_group_apply.1} parent=11 // pred_check
          %p131 = pneg %p48
        $region14: #{_mlp_group_apply.1} parent=11 // pred_check_branch
          %133 = sbr.rel (%p131) target = $region16
        $region15: #{_mlp_group_apply.1} parent=11 // pred_region
          %s134 = smul.u32 2, %s19
          %p135 = scmp.lt.s32.totalorder %s134, 1
          %s136 = scalar_select %p135, %s134, 1
          %s137 = smul.addr %s136, 4
          %s138 = scalar_lea.vmem %s0, %s137
          %s139 = smul.u32 2, %s19
        $region16: #{_mlp_group_apply.1} parent=11 // pred_fallthru
          _
        // Predicated region
        $region17: #{_mlp_group_apply.1} parent=11 // pred_check
          %p140 = pneg %p69
        $region18: #{_mlp_group_apply.1} parent=11 // pred_check_branch
          %142 = sbr.rel (%p140) target = $region20
        $region19: #{_mlp_group_apply.1} parent=11 // pred_region
          %s144 = ssub.s32 3072, 3072
          %145 = vsyncadd [#allocation4], %s144
          %s146 = sshll.u32 [#allocation3], 4
          %s147 = int_to_ptr.vmem [resolvable:$true] %s146
          %152 = dma.hbm_to_vmem [thread:$0]  %s1, 3072, %s147, [#allocation4], 64, 64, 4
        $region20: #{_mlp_group_apply.1} parent=11 // pred_fallthru
          _
        // Predicated region
        $region21: #{_mlp_group_apply.1} parent=11 // pred_check
          %p153 = pneg %p90
        $region22: #{_mlp_group_apply.1} parent=11 // pred_check_branch
          %155 = sbr.rel (%p153) target = $region24
        $region23: #{_mlp_group_apply.1} parent=11 // pred_region
          _
        $region24: #{_mlp_group_apply.1} parent=11 // pred_fallthru
          _
      $region12: #{_mlp_group_apply.1} parent=5 // pred_fallthru
        _
      %p156 = scmp.lt.s32.totalorder %s10, 3
      // Predicated region
      $region25: #{_mlp_group_apply.1} parent=5 // pred_check
        %p157 = pneg %p156
      $region26: #{_mlp_group_apply.1} parent=5 // pred_check_branch
        %159 = sbr.rel (%p157) target = $region28
      $region27: #{_mlp_group_apply.1} parent=5 // pred_region
        _
      $region28: #{_mlp_group_apply.1} parent=5 // pred_fallthru
        _
      %p160 = scmp.le.s32.totalorder 1, %s10
      %p161 = scmp.lt.s32.totalorder %s10, 4
      %p162 = pnand %p160, %p161
      %p163 = pneg %p162
      // Predicated region
      $region29: #{_mlp_group_apply.1} parent=5 // pred_check
        _
      $region30: #{_mlp_group_apply.1} parent=5 // pred_check_branch
        %165 = sbr.rel (%p162) target = $region32
      $region31: #{_mlp_group_apply.1} parent=5 // pred_region
        %s166 = ssub.s32 %s10, 1
        // Predicated region
        $region33: #{_mlp_group_apply.1} parent=31 // pred_check
          %p167 = pneg %p69
        $region34: #{_mlp_group_apply.1} parent=31 // pred_check_branch
          %169 = sbr.rel (%p167) target = $region36
        $region35: #{_mlp_group_apply.1} parent=31 // pred_region
          %170 = dma.done [#allocation4], 3072
        $region36: #{_mlp_group_apply.1} parent=31 // pred_fallthru
          _
        %s171 = smul.u32 2, %s19
        %p172 = scmp.lt.s32.totalorder %s171, 1
        %s173 = scalar_select %p172, %s171, 1
        %s174 = smul.addr %s173, 4
        %s175 = scalar_lea.vmem %s0, %s174
        %p176 = pneg %p48
        %p177 = pneg %p45
        %p178 = pneg %p69
        %p179 = pneg %p66
        %p180 = pneg %p90
        %p181 = pneg %p87
        %p182 = pneg %p116
        %p183 = pneg %p113
        %s184 = smul.u32 2, %s19
        %p185 = scmp.lt.s32.totalorder %s184, 1
        %s186 = scalar_select %p185, %s184, 1
        %s187 = smul.addr %s186, 4
        %s188 = scalar_lea.vmem %s3, %s187
        %s189 = smul.u32 2, %s19
        %p190 = scmp.lt.s32.totalorder %s189, 1
        %s191 = scalar_select %p190, %s189, 1
        %s192 = smul.addr %s191, 4
        %s193 = scalar_lea.vmem %s0, %s192
        %s194 = smul.u32 2, %s19
        %s195 = smul.u32 2, %s19
        %p196 = scmp.lt.s32.totalorder %s195, 1
        %s197 = scalar_select %p196, %s195, 1
        %s198 = smul.addr %s197, 4
        %s199 = scalar_lea.vmem %s3, %s198
        %s200 = smul.u32 2, %s19
        %p202 = scmp.eq.s32.totalorder %s20, 0
        // Predicated region
        $region37: #{_mlp_group_apply.1} parent=31 // pred_check
          %p203 = pneg %p202
        $region38: #{_mlp_group_apply.1} parent=31 // pred_check_branch
          %205 = sbr.rel (%p203) target = $region40
        $region39: #{_mlp_group_apply.1} parent=31 // pred_region
          %v206 = vld [vmem:[%s193] sm:$0xf]
          %v207 = vld [vmem:[%s193 + $0x4] sm:$0xf]
          %208 = vst [vmem:[#allocation2] sm:$0xf] %v206
          %209 = vst [vmem:[#allocation2 + $0x4] sm:$0xf] %v207
        $region40: #{_mlp_group_apply.1} parent=31 // pred_fallthru
          _
        %s210 = smul.u32 %s20, 16
        %s211 = smul.addr %s210, 4
        %s212 = scalar_lea.vmem [#allocation3], %s211
        %v213 = vld [vmem:[%s212] sm:$0xf]
        %v214 = vld [vmem:[%s212 + $0x4] sm:$0xf]
        %v215 = vld [vmem:[%s212 + $0x8] sm:$0xf]
        %v216 = vld [vmem:[%s212 + $0xc] sm:$0xf]
        %v217 = vld [vmem:[%s212 + $0x10] sm:$0xf]
        %v218 = vld [vmem:[%s212 + $0x14] sm:$0xf]
        %v219 = vld [vmem:[%s212 + $0x18] sm:$0xf]
        %v220 = vld [vmem:[%s212 + $0x1c] sm:$0xf]
        %v221 = vld [vmem:[%s212 + $0x20] sm:$0xf]
        %v222 = vld [vmem:[%s212 + $0x24] sm:$0xf]
        %v223 = vld [vmem:[%s212 + $0x28] sm:$0xf]
        %v224 = vld [vmem:[%s212 + $0x2c] sm:$0xf]
        %v225 = vld [vmem:[%s212 + $0x30] sm:$0xf]
        %v226 = vld [vmem:[%s212 + $0x34] sm:$0xf]
        %v227 = vld [vmem:[%s212 + $0x38] sm:$0xf]
        %v228 = vld [vmem:[%s212 + $0x3c] sm:$0xf]
        %s229 = scalar_lea.vmem %s2, %s20
        %v230 = vld [vmem:[%s229] sm:$0x1]
        %v231 = vld [vmem:[#allocation2] sm:$0xf]
        %v232 = vld [vmem:[#allocation2 + $0x4] sm:$0xf]
        %v234 = vlaneseq
        %v235 = vshrl.u32 %v234, 7
        %v236 = vsub.s32 0, %v235
        %v237 = vrot.slane %v230, %v236
        %v241 = vunpack.c.l.b16 %v231
        %v242 = vunpack.c.l.b16 %v232
        %v243 = vpack.c.b16 %v242, %v241
        %v261 = vunpack.c.l.b16 %v213
        %v262 = vunpack.c.l.b16 %v214
        %v263 = vunpack.c.l.b16 %v215
        %v264 = vunpack.c.l.b16 %v216
        %v265 = vunpack.c.l.b16 %v217
        %v266 = vunpack.c.l.b16 %v218
        %v267 = vunpack.c.l.b16 %v219
        %v268 = vunpack.c.l.b16 %v220
        %v269 = vunpack.c.l.b16 %v221
        %v270 = vunpack.c.l.b16 %v222
        %v271 = vunpack.c.l.b16 %v223
        %v272 = vunpack.c.l.b16 %v224
        %v273 = vunpack.c.l.b16 %v225
        %v274 = vunpack.c.l.b16 %v226
        %v275 = vunpack.c.l.b16 %v227
        %v276 = vunpack.c.l.b16 %v228
        %v277 = vpack.c.b16 %v262, %v261
        %v278 = vpack.c.b16 %v264, %v263
        %v279 = vpack.c.b16 %v266, %v265
        %v280 = vpack.c.b16 %v268, %v267
        %v281 = vpack.c.b16 %v270, %v269
        %v282 = vpack.c.b16 %v272, %v271
        %v283 = vpack.c.b16 %v274, %v273
        %v284 = vpack.c.b16 %v276, %v275
        %293 = vmatprep.subr.bf16.mxu0 0
        %294 = vmatpush1.bf16.msra.mxu0 %v284
        %295 = vmatprep.subr.bf16.mxu0 0
        %296 = vmatpush1.bf16.msra.mxu0 %v283
        %297 = vmatprep.subr.bf16.mxu0 0
        %298 = vmatpush1.bf16.msra.mxu0 %v282
        %299 = vmatprep.subr.bf16.mxu0 0
        %300 = vmatpush1.bf16.msra.mxu0 %v281
        %301 = vmatprep.subr.bf16.mxu0 0
        %302 = vmatpush1.bf16.msra.mxu0 %v280
        %303 = vmatprep.subr.bf16.mxu0 0
        %304 = vmatpush1.bf16.msra.mxu0 %v279
        %305 = vmatprep.subr.bf16.mxu0 0
        %306 = vmatpush1.bf16.msra.mxu0 %v278
        %307 = vmatprep.subr.bf16.mxu0 0
        %308 = vmatpush1.bf16.msra.mxu0 %v277
        %309 = vmatprep.subr.bf16.mxu0 0
        %310 = vmatpush2.bf16.msra.mxu0 0
        %311 = vmatprep.subr.bf16.mxu0 0
        %312 = vmatpush2.bf16.msra.mxu0 0
        %313 = vmatprep.subr.bf16.mxu0 0
        %314 = vmatpush2.bf16.msra.mxu0 0
        %315 = vmatprep.subr.bf16.mxu0 0
        %316 = vmatpush2.bf16.msra.mxu0 0
        %317 = vmatprep.subr.bf16.mxu0 0
        %318 = vmatpush2.bf16.msra.mxu0 0
        %319 = vmatprep.subr.bf16.mxu0 0
        %320 = vmatpush2.bf16.msra.mxu0 0
        %321 = vmatprep.subr.bf16.mxu0 0
        %322 = vmatpush2.bf16.msra.mxu0 0
        %323 = vmatprep.subr.bf16.mxu0 0
        %324 = vmatpush2.bf16.msra.mxu0 0
        %325 = vmatprep.mubr.bf16.mxu0 0
        %326 = vmatmul.mubr.bf16.gmra.mxu0 %v243
        %v327 = vpop.f32.mrf.mxu0
        %v328 = vadd.f32 %v237, %v327
        %v329 = vpop.f32.mrf.mxu0
        %v330 = vpop.f32.mrf.mxu0
        %v331 = vadd.f32 %v237, %v330
        %v332 = vpop.f32.mrf.mxu0
        %333 = vdwg.mxu0
        %v334 = vmax.f32 %v328, 0.0
        %v335 = vmax.f32 %v331, 0.0
        %p336 = scmp.lt.s32.totalorder %s20, 2
        // Predicated region
        $region41: #{_mlp_group_apply.1} parent=31 // pred_check
          %p337 = pneg %p336
        $region42: #{_mlp_group_apply.1} parent=31 // pred_check_branch
          %339 = sbr.rel (%p337) target = $region44
        $region43: #{_mlp_group_apply.1} parent=31 // pred_region
          %v340 = vpack.c.bf16 %v335, %v334
          %v342 = vunpack.c.l.b16 %v340
          %v343 = vunpack.c.h.b16 %v340
          %v344 = vpack.c.b16 %v342, %v342
          %v345 = vpack.c.b16 %v343, %v343
          %348 = vst [vmem:[#allocation2] sm:$0xf] %v344
          %349 = vst [vmem:[#allocation2 + $0x4] sm:$0xf] %v345
        $region44: #{_mlp_group_apply.1} parent=31 // pred_fallthru
          _
        %p350 = scmp.eq.s32.totalorder %s20, 2
        // Predicated region
        $region45: #{_mlp_group_apply.1} parent=31 // pred_check
          %p351 = pneg %p350
        $region46: #{_mlp_group_apply.1} parent=31 // pred_check_branch
          %353 = sbr.rel (%p351) target = $region48
        $region47: #{_mlp_group_apply.1} parent=31 // pred_region
          %v354 = vpack.c.bf16 %v335, %v334
          %v356 = vunpack.c.l.b16 %v354
          %v357 = vunpack.c.h.b16 %v354
          %v358 = vpack.c.b16 %v356, %v356
          %v359 = vpack.c.b16 %v357, %v357
          %362 = vst [vmem:[%s199] sm:$0xf] %v358
          %363 = vst [vmem:[%s199 + $0x4] sm:$0xf] %v359
        $region48: #{_mlp_group_apply.1} parent=31 // pred_fallthru
          _
        %s364 = smul.u32 2, %s19
        %p365 = scmp.lt.s32.totalorder %s364, 1
        %s366 = scalar_select %p365, %s364, 1
        %s367 = smul.addr %s366, 4
        %s368 = scalar_lea.vmem %s3, %s367
        // Predicated region
        $region49: #{_mlp_group_apply.1} parent=31 // pred_check
          %p369 = pneg %p113
        $region50: #{_mlp_group_apply.1} parent=31 // pred_check_branch
          %371 = sbr.rel (%p369) target = $region52
        $region51: #{_mlp_group_apply.1} parent=31 // pred_region
          %s372 = smul.u32 2, %s19
        $region52: #{_mlp_group_apply.1} parent=31 // pred_fallthru
          _
        // Predicated region
        $region53: #{_mlp_group_apply.1} parent=31 // pred_check
          %p373 = pneg %p113
        $region54: #{_mlp_group_apply.1} parent=31 // pred_check_branch
          %375 = sbr.rel (%p373) target = $region56
        $region55: #{_mlp_group_apply.1} parent=31 // pred_region
          %s376 = smul.u32 2, %s19
          %p377 = scmp.lt.s32.totalorder %s376, 1
          %s378 = scalar_select %p377, %s376, 1
          %s379 = smul.addr %s378, 4
          %s380 = scalar_lea.vmem %s3, %s379
        $region56: #{_mlp_group_apply.1} parent=31 // pred_fallthru
          _
      $region32: #{_mlp_group_apply.1} parent=5 // pred_fallthru
        _
      %p381 = scmp.le.s32.totalorder 2, %s10
      // Predicated region
      $region57: #{_mlp_group_apply.1} parent=5 // pred_check
        %p382 = pneg %p381
      $region58: #{_mlp_group_apply.1} parent=5 // pred_check_branch
        %384 = sbr.rel (%p382) target = $region60
      $region59: #{_mlp_group_apply.1} parent=5 // pred_region
        %s385 = ssub.s32 %s10, 2
      $region60: #{_mlp_group_apply.1} parent=5 // pred_fallthru
        _
    $region6: #{_mlp_group_apply.1} parent=1 // loop_footer
      %s14 = sadd.s32 1, %s10
    $region7: #{_mlp_group_apply.1} parent=1 // loop_footer_branch
      %9 = sbr.rel target = $region3
    $region8: #{_mlp_group_apply.1} parent=1 // loop_exit
      _
    %386 = vsyncpa [#allocation4], 1
    %s387 = scalar_lea.sflag [#allocation4], 1
    %388 = vsyncpa %s387, 1

</llo_original>
